<compile_context>
chip_gen: v7x
topology: tpu7x:2x2x1
jax: 0.10.0
libtpu: 0.0.40
codegen_flags: <defaults>
</compile_context>

<pallas_src>
import functools
import math

import jax
import jax.numpy as jnp
from jax import lax
from jax.experimental import pallas as pl
from jax.experimental.pallas import tpu as pltpu


def mlp_kernel(*refs, num_layers, chunk, compute_dtype):
    # refs = (x_ref, w0_ref, b0_ref, w1_ref, b1_ref, ..., o_ref)
    # x_ref:  [tile_n, dim_in]   (input dtype, natural row-major layout)
    # w_ref:  [out_l, in_l]      (native PyTorch Linear layout, compute_dtype)
    # b_ref:  [out_l, 1]         (f32)
    # o_ref:  [dim_out, tile_n]  (lane-dense output store)
    x_ref = refs[0]
    o_ref = refs[-1]
    param_refs = refs[1:-1]

    # Hoist the (tiny) weight/bias loads out of the lane-chunk loop: one VMEM read
    # per block instead of one per chunk.
    ws = [param_refs[2 * l][...] for l in range(num_layers)]      # [out_l, in_l]
    bs = [param_refs[2 * l + 1][...] for l in range(num_layers)]  # [out_l, 1] f32
    # NOTE on the bias broadcast: we keep b as [out_l, 1] and let the add lane-splat
    # it per chunk rather than pre-broadcasting to [out_l, chunk] outside the loop --
    # a pre-broadcast f32 [64, 512] would pin ~32 vregs per layer for the whole loop,
    # exactly the register pressure the chunk loop exists to avoid.

    tile_n = x_ref.shape[0]
    n_chunks = tile_n // chunk

    def chunk_body(c, carry):
        start = pl.multiple_of(c * chunk, chunk)                  # aligned slice hint
        xc = x_ref[pl.ds(start, chunk), :].astype(compute_dtype)  # [chunk, dim_in]
        # Layer 0: contract the shared `dim_in` axis of W [out0, dim_in] with
        # x [chunk, dim_in] -> lane-dense [out0, chunk].  Same q@k.T-style
        # dot_general the MXU handles natively; no transpose of x anywhere.
        h = lax.dot_general(
            ws[0], xc, (((1,), (1,)), ((), ())),
            preferred_element_type=jnp.float32) + bs[0]
        for l in range(1, num_layers):
            h = jnp.maximum(h, 0.0)          # F.relu in f32 (v5e: no bf16 VPU)
            h = h.astype(compute_dtype)      # bf16 operand for the next MXU pass
            h = jnp.dot(ws[l], h, preferred_element_type=jnp.float32) + bs[l]
        o_ref[:, pl.ds(start, chunk)] = h.astype(o_ref.dtype)
        return carry

    lax.fori_loop(0, n_chunks, chunk_body, 0, unroll=True)


def mlp_forward(x, weights, biases, *, tile_n=2048, chunk_n=512,
                compute_dtype=jnp.bfloat16, out_dtype=jnp.float32,
                module_layout=False):
    """Forward pass matching a chain of nn.Linear with interleaved ReLU.

    x:          [N, dim_in]        (natural PyTorch layout; any float dtype)
    weights[l]: [out_l, in_l]      (PyTorch nn.Linear layout, NOT transposed)
    biases[l]:  [out_l]
    Returns     [dim_out, N] (lane-dense, out_dtype) by default, or
                [N, dim_out] if module_layout=True (adds one XLA transpose pass).
    """
    N, dim_in = x.shape
    num_layers = len(weights)
    dim_out = weights[-1].shape[0]

    # Lane chunk must be a multiple of 128; the DMA tile a multiple of the chunk
    # (and hence of 8, satisfying the (8,128) block constraints on x / output).
    chunk_n = max(128, (chunk_n // 128) * 128)
    if tile_n < chunk_n:
        tile_n = chunk_n
    tile_n = (tile_n // chunk_n) * chunk_n

    grid = (pl.cdiv(N, tile_n),)

    in_specs = [pl.BlockSpec((tile_n, dim_in), lambda i: (i, 0))]  # natural layout
    params = []
    for w, b in zip(weights, biases):
        w = w.astype(compute_dtype)                       # tiny, resident in VMEM
        b = jnp.reshape(b, (-1, 1)).astype(jnp.float32)   # [out_l, 1] f32
        in_specs.append(pl.BlockSpec(w.shape, lambda i: (0, 0)))   # never re-fetched
        in_specs.append(pl.BlockSpec(b.shape, lambda i: (0, 0)))
        params.append(w)
        params.append(b)

    out_specs = pl.BlockSpec((dim_out, tile_n), lambda i: (0, i))  # lane-dense store

    kernel = functools.partial(mlp_kernel, num_layers=num_layers,
                               chunk=chunk_n, compute_dtype=compute_dtype)
    outT = pl.pallas_call(
        kernel,
        out_shape=jax.ShapeDtypeStruct((dim_out, N), out_dtype),
        grid_spec=pltpu.PrefetchScalarGridSpec(
            num_scalar_prefetch=0,
            grid=grid,
            in_specs=in_specs,
            out_specs=out_specs,
        ),
        compiler_params=pltpu.CompilerParams(
            dimension_semantics=("parallel",)),
    )(x, *params)

    if module_layout:
        # PyTorch-facing [N, dim_out]; prefer consuming [dim_out, N] directly.
        return jnp.swapaxes(outT, 0, 1)
    return outT


def init_mlp_params(key, dim_in, dim_out, dim_hidden, num_layers, bias=True):
    """Deterministic init matching nn.Linear defaults:
    weight, bias ~ U(-1/sqrt(fan_in), 1/sqrt(fan_in)).
    Weights stored in PyTorch layout [out, in]; biases as [out]."""
    weights, biases = [], []
    for l in range(num_layers):
        fan_in = dim_in if l == 0 else dim_hidden
        fan_out = dim_out if l == num_layers - 1 else dim_hidden
        key, kw, kb = jax.random.split(key, 3)
        bound = 1.0 / math.sqrt(float(fan_in))
        w = jax.random.uniform(kw, (fan_out, fan_in), jnp.float32, -bound, bound)
        if bias:
            b = jax.random.uniform(kb, (fan_out,), jnp.float32, -bound, bound)
        else:
            b = jnp.zeros((fan_out,), jnp.float32)
        weights.append(w)
        biases.append(b)
    return weights, biases


def mlp_reference(x, weights, biases, compute_dtype=jnp.bfloat16):
    """PyTorch-semantics reference (x @ W.T + b, ReLU between layers) using the same
    bf16-operand / f32-accumulate recipe as the kernel.  Returns [N, dim_out] f32."""
    h = x.astype(compute_dtype)
    n = len(weights)
    for l in range(n):
        acc = jnp.dot(h, weights[l].astype(compute_dtype).T,
                      preferred_element_type=jnp.float32)
        acc = acc + biases[l].astype(jnp.float32)[None, :]
        if l != n - 1:
            acc = jnp.maximum(acc, 0.0)
            h = acc.astype(compute_dtype)
        else:
            h = acc
    return h


if __name__ == "__main__":
    # Shapes consistent with the module's use in StableDreamFusion (encoder dim 32,
    # hidden 64, small output head).  N is deliberately NOT a multiple of tile_n so
    # the partial-last-block path is exercised, and tile_n=512 gives grid=(9,) so a
    # v7x megacore gets multiple steps per TensorCore.
    N = 4100
    dim_in = 32
    dim_hidden = 64
    dim_out = 16
    num_layers = 3

    key = jax.random.PRNGKey(0)
    key, kx = jax.random.split(key)
    x = jax.random.normal(kx, (N, dim_in), jnp.float32)

    weights, biases = init_mlp_params(key, dim_in, dim_out, dim_hidden, num_layers)

    # Lane-dense result ([dim_out, N], f32) -- the preferred fused-consumer layout.
    out = mlp_forward(x, weights, biases, tile_n=512, chunk_n=512)
    out = jax.block_until_ready(out)
    assert out.shape == (dim_out, N)
    assert out.dtype == jnp.float32

    ref = mlp_reference(x, weights, biases)  # [N, dim_out] f32
    max_err = float(jnp.max(jnp.abs(out - ref.T)))
    assert jnp.allclose(out, ref.T, atol=5e-3, rtol=5e-3), (
        f"mismatch vs JAX reference, max abs err {max_err}")

    # Module-facing layout path ([N, dim_out]) for PyTorch-compatible callers.
    out_m = jax.block_until_ready(
        mlp_forward(x, weights, biases, tile_n=512, chunk_n=512, module_layout=True))
    assert out_m.shape == (N, dim_out)
    assert jnp.allclose(out_m, ref, atol=5e-3, rtol=5e-3)

    print("KERNEL_OK")
</pallas_src>

<mosaic_0001>
module attributes {stable_mosaic.version = 11 : i64} {
  func.func @mlp_kernel(%arg0: i32, %arg1: memref<512x32xf32, #tpu.memory_space<vmem>>, %arg2: memref<64x32xbf16, #tpu.memory_space<vmem>>, %arg3: memref<64x1xf32, #tpu.memory_space<vmem>>, %arg4: memref<64x64xbf16, #tpu.memory_space<vmem>>, %arg5: memref<64x1xf32, #tpu.memory_space<vmem>>, %arg6: memref<16x64xbf16, #tpu.memory_space<vmem>>, %arg7: memref<16x1xf32, #tpu.memory_space<vmem>>, %arg8: memref<16x512xf32, #tpu.memory_space<vmem>>) attributes {dimension_semantics = [#tpu.dimension_semantics<parallel>], iteration_bounds = array<i64: 9>, scalar_prefetch = 0 : i64, scratch_operands = 0 : i64, tpu.core_type = #tpu.core_type<tc>, window_params = [{transform_indices = @transform_0, window_bounds = array<i64: 512, 32>}, {pipeline_mode = #tpu.pipeline_mode<synchronous>, transform_indices = @transform_1, window_bounds = array<i64: 64, 32>}, {pipeline_mode = #tpu.pipeline_mode<synchronous>, transform_indices = @transform_2, window_bounds = array<i64: 64, 1>}, {pipeline_mode = #tpu.pipeline_mode<synchronous>, transform_indices = @transform_3, window_bounds = array<i64: 64, 64>}, {pipeline_mode = #tpu.pipeline_mode<synchronous>, transform_indices = @transform_4, window_bounds = array<i64: 64, 1>}, {pipeline_mode = #tpu.pipeline_mode<synchronous>, transform_indices = @transform_5, window_bounds = array<i64: 16, 64>}, {pipeline_mode = #tpu.pipeline_mode<synchronous>, transform_indices = @transform_6, window_bounds = array<i64: 16, 1>}, {transform_indices = @transform_7, window_bounds = array<i64: 16, 512>}]} {
    %c0 = arith.constant 0 : index
    %c0_0 = arith.constant 0 : index
    %0 = vector.load %arg2[%c0, %c0_0] : memref<64x32xbf16, #tpu.memory_space<vmem>>, vector<64x32xbf16>
    %c0_1 = arith.constant 0 : index
    %c0_2 = arith.constant 0 : index
    %1 = vector.load %arg4[%c0_1, %c0_2] : memref<64x64xbf16, #tpu.memory_space<vmem>>, vector<64x64xbf16>
    %c0_3 = arith.constant 0 : index
    %c0_4 = arith.constant 0 : index
    %2 = vector.load %arg6[%c0_3, %c0_4] : memref<16x64xbf16, #tpu.memory_space<vmem>>, vector<16x64xbf16>
    %c0_5 = arith.constant 0 : index
    %c0_6 = arith.constant 0 : index
    %3 = vector.load %arg3[%c0_5, %c0_6] : memref<64x1xf32, #tpu.memory_space<vmem>>, vector<64x1xf32>
    %c0_7 = arith.constant 0 : index
    %c0_8 = arith.constant 0 : index
    %4 = vector.load %arg5[%c0_7, %c0_8] : memref<64x1xf32, #tpu.memory_space<vmem>>, vector<64x1xf32>
    %c0_9 = arith.constant 0 : index
    %c0_10 = arith.constant 0 : index
    %5 = vector.load %arg7[%c0_9, %c0_10] : memref<16x1xf32, #tpu.memory_space<vmem>>, vector<16x1xf32>
    %c0_i32 = arith.constant 0 : i32
    %c512_i32 = arith.constant 512 : i32
    %6 = arith.muli %c0_i32, %c512_i32 : i32
    %7 = tpu.assume_multiple %6, 512 : i32
    %8 = arith.index_cast %7 : i32 to index
    %c0_11 = arith.constant 0 : index
    %9 = vector.load %arg1[%8, %c0_11] : memref<512x32xf32, #tpu.memory_space<vmem>>, vector<512x32xf32>
    %10 = arith.truncf %9 : vector<512x32xf32> to vector<512x32xbf16>
    %cst = arith.constant dense<0.000000e+00> : vector<64x512xf32>
    %11 = tpu.matmul %0, %10, %cst {dimension_numbers = #tpu.dot_dimension_numbers<[1], [1], [0], [0], [0, 0, 1, 0], [], []>} : vector<64x32xbf16>, vector<512x32xbf16>, vector<64x512xf32> -> vector<64x512xf32>
    %12 = vector.broadcast %3 : vector<64x1xf32> to vector<64x512xf32>
    %13 = arith.addf %11, %12 : vector<64x512xf32>
    %cst_12 = arith.constant 0.000000e+00 : f32
    %14 = vector.broadcast %cst_12 : f32 to vector<64x512xf32>
    %15 = arith.maximumf %13, %14 : vector<64x512xf32>
    %16 = arith.truncf %15 : vector<64x512xf32> to vector<64x512xbf16>
    %cst_13 = arith.constant dense<0.000000e+00> : vector<64x512xf32>
    %17 = tpu.matmul %1, %16, %cst_13 {dimension_numbers = #tpu.dot_dimension_numbers<[1], [0], [0], [1], [0, 0, 1, 1], [], []>} : vector<64x64xbf16>, vector<64x512xbf16>, vector<64x512xf32> -> vector<64x512xf32>
    %18 = vector.broadcast %4 : vector<64x1xf32> to vector<64x512xf32>
    %19 = arith.addf %17, %18 : vector<64x512xf32>
    %cst_14 = arith.constant 0.000000e+00 : f32
    %20 = vector.broadcast %cst_14 : f32 to vector<64x512xf32>
    %21 = arith.maximumf %19, %20 : vector<64x512xf32>
    %22 = arith.truncf %21 : vector<64x512xf32> to vector<64x512xbf16>
    %cst_15 = arith.constant dense<0.000000e+00> : vector<16x512xf32>
    %23 = tpu.matmul %2, %22, %cst_15 {dimension_numbers = #tpu.dot_dimension_numbers<[1], [0], [0], [1], [0, 0, 1, 1], [], []>} : vector<16x64xbf16>, vector<64x512xbf16>, vector<16x512xf32> -> vector<16x512xf32>
    %24 = vector.broadcast %5 : vector<16x1xf32> to vector<16x512xf32>
    %25 = arith.addf %23, %24 : vector<16x512xf32>
    %c0_16 = arith.constant 0 : index
    %26 = arith.index_cast %7 : i32 to index
    %27 = vector.load %arg8[%c0_16, %26] : memref<16x512xf32, #tpu.memory_space<vmem>>, vector<16x512xf32>
    tpu.vector_store %arg8[%c0_16, %26], %25 {strides = array<i32>} : memref<16x512xf32, #tpu.memory_space<vmem>>, vector<16x512xf32>,
    %c1_i32 = arith.constant 1 : i32
    return
  }
  func.func @transform_0(%arg0: i32) -> (i32, i32) {
    %c0_i32 = arith.constant 0 : i32
    %c0_i32_0 = arith.constant 0 : i32
    return %arg0, %c0_i32 : i32, i32
  }
  func.func @transform_1(%arg0: i32) -> (i32, i32) {
    %c0_i32 = arith.constant 0 : i32
    %c0_i32_0 = arith.constant 0 : i32
    %c0_i32_1 = arith.constant 0 : i32
    return %c0_i32, %c0_i32_0 : i32, i32
  }
  func.func @transform_2(%arg0: i32) -> (i32, i32) {
    %c0_i32 = arith.constant 0 : i32
    %c0_i32_0 = arith.constant 0 : i32
    %c0_i32_1 = arith.constant 0 : i32
    return %c0_i32, %c0_i32_0 : i32, i32
  }
  func.func @transform_3(%arg0: i32) -> (i32, i32) {
    %c0_i32 = arith.constant 0 : i32
    %c0_i32_0 = arith.constant 0 : i32
    %c0_i32_1 = arith.constant 0 : i32
    return %c0_i32, %c0_i32_0 : i32, i32
  }
  func.func @transform_4(%arg0: i32) -> (i32, i32) {
    %c0_i32 = arith.constant 0 : i32
    %c0_i32_0 = arith.constant 0 : i32
    %c0_i32_1 = arith.constant 0 : i32
    return %c0_i32, %c0_i32_0 : i32, i32
  }
  func.func @transform_5(%arg0: i32) -> (i32, i32) {
    %c0_i32 = arith.constant 0 : i32
    %c0_i32_0 = arith.constant 0 : i32
    %c0_i32_1 = arith.constant 0 : i32
    return %c0_i32, %c0_i32_0 : i32, i32
  }
  func.func @transform_6(%arg0: i32) -> (i32, i32) {
    %c0_i32 = arith.constant 0 : i32
    %c0_i32_0 = arith.constant 0 : i32
    %c0_i32_1 = arith.constant 0 : i32
    return %c0_i32, %c0_i32_0 : i32, i32
  }
  func.func @transform_7(%arg0: i32) -> (i32, i32) {
    %c0_i32 = arith.constant 0 : i32
    %c0_i32_0 = arith.constant 0 : i32
    return %c0_i32, %arg0 : i32, i32
  }
}

</mosaic_0001>

<llo_original>
// kernel: tpu_custom_call.1
$region0: #{tpu_custom_call.1}
  #allocation0 [shape = 'u32[]', space=smem, size = 0x4, offset = 0x4, fixed_abs, tag = 'smem constant byte address 0x4 - core index']
  #allocation1 [shape = 'u32[144,128]{1,0:T(1,128)}', space=vmem, size = 0x12000, scoped, tag = 'internal scratch']
  %s0 = inlined_call_operand.vmem [shape: f32[4100,32], index: 0, kind: input, shape index: {}]
  %s1 = inlined_call_operand.vmem [shape: bf16[64,32], index: 1, kind: input, shape index: {}]
  %s2 = inlined_call_operand.vmem [shape: f32[64,1], index: 2, kind: input, shape index: {}]
  %s3 = inlined_call_operand.vmem [shape: bf16[64,64], index: 3, kind: input, shape index: {}]
  %s4 = inlined_call_operand.vmem [shape: f32[64,1], index: 4, kind: input, shape index: {}]
  %s5 = inlined_call_operand.vmem [shape: bf16[16,64], index: 5, kind: input, shape index: {}]
  %s6 = inlined_call_operand.vmem [shape: f32[16,1], index: 6, kind: input, shape index: {}]
  %s7 = inlined_call_operand.hbm [shape: f32[16,4100], index: 7, kind: output, shape index: {}]
  %s8 = sld [smem:[#allocation0]]
  $region61: #{tpu_custom_call.1} parent=0
    _
  %s10 = ssub.s32 1, %s8
  %s11 = scalar_select 0, %s10, %s8
  $region1: #{tpu_custom_call.1} parent=0
    #allocation2 [shape = 'u8[65536]{0}', space=vmem, size = 0x10000, scoped, tag = 'output window, operand 0']
    #allocation3 [shape = 's32[2]{0}', space=sflag, size = 0x8, scoped, tag = 'scoped memory for tpu_custom_call.1']
    %12 = vsyncpa [#allocation3], 0
    %s13 = scalar_lea.sflag [#allocation3], 1
    %14 = vsyncpa %s13, 0
    loop: start=0, step=1, limit=11
    $region2: #{tpu_custom_call.1} parent=1 // loop_pre_header
      _
    $region3: #{tpu_custom_call.1} parent=1 // loop_header
      %s16 = sphi 0, %s20
      %p17 = scmp.ge.s32.totalorder %s16, 11
      %s26 = sphi 0, %s28
      %s29 = sphi 0, %s26
      %s30 = sphi 0, %s29
      %s46 = sphi 0, %s30
      %s50 = sphi 0, %s50
      %s52 = sphi 0, %s50
      %s53 = sphi 0, %s52
      %s67 = sphi 0, %s53
      %s71 = sphi 0, %s71
      %s73 = sphi 0, %s71
      %s74 = sphi 0, %s73
      %s88 = sphi 0, %s74
      %s92 = sphi 0, %s92
      %s94 = sphi 0, %s92
      %s95 = sphi 0, %s94
      %s109 = sphi 0, %s95
      %s113 = sphi 0, %s113
      %s115 = sphi 0, %s113
      %s116 = sphi 0, %s115
      %s130 = sphi 0, %s116
      %s134 = sphi 0, %s134
      %s136 = sphi 0, %s134
      %s137 = sphi 0, %s136
      %s151 = sphi 0, %s137
      %s155 = sphi 0, %s155
      %s157 = sphi 0, %s155
      %s158 = sphi 0, %s157
      %s172 = sphi 0, %s158
      %s178 = sphi 0, %s180
      %s181 = sphi 0, %s178
      %s182 = sphi 0, %s181
      %s198 = sphi 0, %s182
    $region4: #{tpu_custom_call.1} parent=1 // loop_header_branch
      %19 = sbr.rel (%p17) target = $region8
    $region5: #{tpu_custom_call.1} parent=1 // loop_body
      %s21 = ssub.s32 %s16, 1
      %s22 = ssub.s32 %s16, 2
      %s23 = sadd.s32 %s16, 1
      %s24 = ssub.s32 %s16, %s23
      %p25 = scmp.eq.s32.totalorder %s24, 0
      %s27 = sadd.s32 %s26, 1
      %s28 = scalar_select %p25, %s26, %s27
      %p31 = pneg %p25
      %p32 = scmp.eq.s32.totalorder %s16, 8
      %p33 = por %p31, %p32
      %p34 = scmp.ne.s32.totalorder %s26, %s29
      %p35 = scmp.eq.s32.totalorder %s16, 0
      %p36 = por %p34, %p35
      %p37 = scmp.ne.s32.totalorder %s26, %s29
      %p38 = scmp.eq.s32.totalorder %s21, 8
      %p39 = por %p37, %p38
      %p40 = scmp.ne.s32.totalorder %s29, %s30
      %p41 = scmp.eq.s32.totalorder %s21, 0
      %p42 = por %p40, %p41
      %p43 = scmp.ne.s32.totalorder %s29, %s30
      %p44 = scmp.eq.s32.totalorder %s22, 8
      %p45 = por %p43, %p44
      %p47 = scmp.ne.s32.totalorder %s30, %s46
      %p48 = scmp.eq.s32.totalorder %s22, 0
      %p49 = por %p47, %p48
      %s51 = sadd.s32 %s50, 1
      %p54 = scmp.eq.s32.totalorder %s16, 8
      %p55 = scmp.ne.s32.totalorder %s50, %s52
      %p56 = scmp.eq.s32.totalorder %s16, 0
      %p57 = por %p55, %p56
      %p58 = scmp.ne.s32.totalorder %s50, %s52
      %p59 = scmp.eq.s32.totalorder %s21, 8
      %p60 = por %p58, %p59
      %p61 = scmp.ne.s32.totalorder %s52, %s53
      %p62 = scmp.eq.s32.totalorder %s21, 0
      %p63 = por %p61, %p62
      %p64 = scmp.ne.s32.totalorder %s52, %s53
      %p65 = scmp.eq.s32.totalorder %s22, 8
      %p66 = por %p64, %p65
      %p68 = scmp.ne.s32.totalorder %s53, %s67
      %p69 = scmp.eq.s32.totalorder %s22, 0
      %p70 = por %p68, %p69
      %s72 = sadd.s32 %s71, 1
      %p75 = scmp.eq.s32.totalorder %s16, 8
      %p76 = scmp.ne.s32.totalorder %s71, %s73
      %p77 = scmp.eq.s32.totalorder %s16, 0
      %p78 = por %p76, %p77
      %p79 = scmp.ne.s32.totalorder %s71, %s73
      %p80 = scmp.eq.s32.totalorder %s21, 8
      %p81 = por %p79, %p80
      %p82 = scmp.ne.s32.totalorder %s73, %s74
      %p83 = scmp.eq.s32.totalorder %s21, 0
      %p84 = por %p82, %p83
      %p85 = scmp.ne.s32.totalorder %s73, %s74
      %p86 = scmp.eq.s32.totalorder %s22, 8
      %p87 = por %p85, %p86
      %p89 = scmp.ne.s32.totalorder %s74, %s88
      %p90 = scmp.eq.s32.totalorder %s22, 0
      %p91 = por %p89, %p90
      %s93 = sadd.s32 %s92, 1
      %p96 = scmp.eq.s32.totalorder %s16, 8
      %p97 = scmp.ne.s32.totalorder %s92, %s94
      %p98 = scmp.eq.s32.totalorder %s16, 0
      %p99 = por %p97, %p98
      %p100 = scmp.ne.s32.totalorder %s92, %s94
      %p101 = scmp.eq.s32.totalorder %s21, 8
      %p102 = por %p100, %p101
      %p103 = scmp.ne.s32.totalorder %s94, %s95
      %p104 = scmp.eq.s32.totalorder %s21, 0
      %p105 = por %p103, %p104
      %p106 = scmp.ne.s32.totalorder %s94, %s95
      %p107 = scmp.eq.s32.totalorder %s22, 8
      %p108 = por %p106, %p107
      %p110 = scmp.ne.s32.totalorder %s95, %s109
      %p111 = scmp.eq.s32.totalorder %s22, 0
      %p112 = por %p110, %p111
      %s114 = sadd.s32 %s113, 1
      %p117 = scmp.eq.s32.totalorder %s16, 8
      %p118 = scmp.ne.s32.totalorder %s113, %s115
      %p119 = scmp.eq.s32.totalorder %s16, 0
      %p120 = por %p118, %p119
      %p121 = scmp.ne.s32.totalorder %s113, %s115
      %p122 = scmp.eq.s32.totalorder %s21, 8
      %p123 = por %p121, %p122
      %p124 = scmp.ne.s32.totalorder %s115, %s116
      %p125 = scmp.eq.s32.totalorder %s21, 0
      %p126 = por %p124, %p125
      %p127 = scmp.ne.s32.totalorder %s115, %s116
      %p128 = scmp.eq.s32.totalorder %s22, 8
      %p129 = por %p127, %p128
      %p131 = scmp.ne.s32.totalorder %s116, %s130
      %p132 = scmp.eq.s32.totalorder %s22, 0
      %p133 = por %p131, %p132
      %s135 = sadd.s32 %s134, 1
      %p138 = scmp.eq.s32.totalorder %s16, 8
      %p139 = scmp.ne.s32.totalorder %s134, %s136
      %p140 = scmp.eq.s32.totalorder %s16, 0
      %p141 = por %p139, %p140
      %p142 = scmp.ne.s32.totalorder %s134, %s136
      %p143 = scmp.eq.s32.totalorder %s21, 8
      %p144 = por %p142, %p143
      %p145 = scmp.ne.s32.totalorder %s136, %s137
      %p146 = scmp.eq.s32.totalorder %s21, 0
      %p147 = por %p145, %p146
      %p148 = scmp.ne.s32.totalorder %s136, %s137
      %p149 = scmp.eq.s32.totalorder %s22, 8
      %p150 = por %p148, %p149
      %p152 = scmp.ne.s32.totalorder %s137, %s151
      %p153 = scmp.eq.s32.totalorder %s22, 0
      %p154 = por %p152, %p153
      %s156 = sadd.s32 %s155, 1
      %p159 = scmp.eq.s32.totalorder %s16, 8
      %p160 = scmp.ne.s32.totalorder %s155, %s157
      %p161 = scmp.eq.s32.totalorder %s16, 0
      %p162 = por %p160, %p161
      %p163 = scmp.ne.s32.totalorder %s155, %s157
      %p164 = scmp.eq.s32.totalorder %s21, 8
      %p165 = por %p163, %p164
      %p166 = scmp.ne.s32.totalorder %s157, %s158
      %p167 = scmp.eq.s32.totalorder %s21, 0
      %p168 = por %p166, %p167
      %p169 = scmp.ne.s32.totalorder %s157, %s158
      %p170 = scmp.eq.s32.totalorder %s22, 8
      %p171 = por %p169, %p170
      %p173 = scmp.ne.s32.totalorder %s158, %s172
      %p174 = scmp.eq.s32.totalorder %s22, 0
      %p175 = por %p173, %p174
      %s176 = ssub.s32 %s16, %s23
      %p177 = scmp.eq.s32.totalorder %s176, 0
      %s179 = sadd.s32 %s178, 1
      %s180 = scalar_select %p177, %s178, %s179
      %p183 = pneg %p177
      %p184 = scmp.eq.s32.totalorder %s16, 8
      %p185 = por %p183, %p184
      %p186 = scmp.ne.s32.totalorder %s178, %s181
      %p187 = scmp.eq.s32.totalorder %s16, 0
      %p188 = por %p186, %p187
      %p189 = scmp.ne.s32.totalorder %s178, %s181
      %p190 = scmp.eq.s32.totalorder %s21, 8
      %p191 = por %p189, %p190
      %p192 = scmp.ne.s32.totalorder %s181, %s182
      %p193 = scmp.eq.s32.totalorder %s21, 0
      %p194 = por %p192, %p193
      %p195 = scmp.ne.s32.totalorder %s181, %s182
      %p196 = scmp.eq.s32.totalorder %s22, 8
      %p197 = por %p195, %p196
      %p199 = scmp.ne.s32.totalorder %s182, %s198
      %p200 = scmp.eq.s32.totalorder %s22, 0
      %p201 = por %p199, %p200
      %p202 = scmp.le.s32.totalorder 1, %s16
      %p203 = scmp.lt.s32.totalorder %s16, 10
      %p204 = pnand %p202, %p203
      %p205 = pneg %p204
      // Predicated region
      $region9: #{tpu_custom_call.1} parent=5 // pred_check
        _
      $region10: #{tpu_custom_call.1} parent=5 // pred_check_branch
        %207 = sbr.rel (%p204) target = $region12
      $region11: #{tpu_custom_call.1} parent=5 // pred_region
        %s208 = ssub.s32 %s16, 1
        // Predicated region
        $region13: #{tpu_custom_call.1} parent=11 // pred_check
          %p209 = pneg %p63
        $region14: #{tpu_custom_call.1} parent=11 // pred_check_branch
          %211 = sbr.rel (%p209) target = $region16
        $region15: #{tpu_custom_call.1} parent=11 // pred_region
          _
        $region16: #{tpu_custom_call.1} parent=11 // pred_fallthru
          _
        // Predicated region
        $region17: #{tpu_custom_call.1} parent=11 // pred_check
          %p212 = pneg %p84
        $region18: #{tpu_custom_call.1} parent=11 // pred_check_branch
          %214 = sbr.rel (%p212) target = $region20
        $region19: #{tpu_custom_call.1} parent=11 // pred_region
          _
        $region20: #{tpu_custom_call.1} parent=11 // pred_fallthru
          _
        // Predicated region
        $region21: #{tpu_custom_call.1} parent=11 // pred_check
          %p215 = pneg %p105
        $region22: #{tpu_custom_call.1} parent=11 // pred_check_branch
          %217 = sbr.rel (%p215) target = $region24
        $region23: #{tpu_custom_call.1} parent=11 // pred_region
          _
        $region24: #{tpu_custom_call.1} parent=11 // pred_fallthru
          _
        // Predicated region
        $region25: #{tpu_custom_call.1} parent=11 // pred_check
          %p218 = pneg %p126
        $region26: #{tpu_custom_call.1} parent=11 // pred_check_branch
          %220 = sbr.rel (%p218) target = $region28
        $region27: #{tpu_custom_call.1} parent=11 // pred_region
          _
        $region28: #{tpu_custom_call.1} parent=11 // pred_fallthru
          _
        // Predicated region
        $region29: #{tpu_custom_call.1} parent=11 // pred_check
          %p221 = pneg %p147
        $region30: #{tpu_custom_call.1} parent=11 // pred_check_branch
          %223 = sbr.rel (%p221) target = $region32
        $region31: #{tpu_custom_call.1} parent=11 // pred_region
          _
        $region32: #{tpu_custom_call.1} parent=11 // pred_fallthru
          _
        // Predicated region
        $region33: #{tpu_custom_call.1} parent=11 // pred_check
          %p224 = pneg %p168
        $region34: #{tpu_custom_call.1} parent=11 // pred_check_branch
          %226 = sbr.rel (%p224) target = $region36
        $region35: #{tpu_custom_call.1} parent=11 // pred_region
          _
        $region36: #{tpu_custom_call.1} parent=11 // pred_fallthru
          _
      $region12: #{tpu_custom_call.1} parent=5 // pred_fallthru
        _
      %p227 = scmp.lt.s32.totalorder %s16, 9
      // Predicated region
      $region37: #{tpu_custom_call.1} parent=5 // pred_check
        %p228 = pneg %p227
      $region38: #{tpu_custom_call.1} parent=5 // pred_check_branch
        %230 = sbr.rel (%p228) target = $region40
      $region39: #{tpu_custom_call.1} parent=5 // pred_region
        // Predicated region
        $region41: #{tpu_custom_call.1} parent=39 // pred_check
          %p231 = pneg %p36
        $region42: #{tpu_custom_call.1} parent=39 // pred_check_branch
          %233 = sbr.rel (%p231) target = $region44
        $region43: #{tpu_custom_call.1} parent=39 // pred_region
          %s234 = smul.u32 64, %s16
          %s235 = ssub.s32 513, %s234
          %p236 = scmp.lt.s32.totalorder %s235, 64
          %s237 = scalar_select %p236, %s235, 64
          %s238 = smul.u32 128, %s237
          %p239 = scmp.lt.s32.totalorder %s234, 512
          %s240 = scalar_select %p239, %s234, 512
          %s241 = smul.addr %s240, 8
          %s242 = scalar_lea.vmem %s0, %s241
          %s243 = smul.u32 64, %s16
          %s244 = ssub.s32 513, %s243
          %p245 = scmp.lt.s32.totalorder %s244, 64
          %s246 = scalar_select %p245, %s244, 64
          %s247 = smul.u32 128, %s246
        $region44: #{tpu_custom_call.1} parent=39 // pred_fallthru
          _
      $region40: #{tpu_custom_call.1} parent=5 // pred_fallthru
        _
      %p248 = scmp.le.s32.totalorder 1, %s16
      %p249 = scmp.lt.s32.totalorder %s16, 10
      %p250 = pnand %p248, %p249
      %p251 = pneg %p250
      // Predicated region
      $region45: #{tpu_custom_call.1} parent=5 // pred_check
        _
      $region46: #{tpu_custom_call.1} parent=5 // pred_check_branch
        %253 = sbr.rel (%p250) target = $region48
      $region47: #{tpu_custom_call.1} parent=5 // pred_region
        %s254 = ssub.s32 %s16, 1
        %s255 = smul.u32 64, %s21
        %s256 = ssub.s32 513, %s255
        %p257 = scmp.lt.s32.totalorder %s256, 64
        %s258 = scalar_select %p257, %s256, 64
        %s259 = smul.u32 128, %s258
        %p260 = scmp.lt.s32.totalorder %s255, 512
        %s261 = scalar_select %p260, %s255, 512
        %s262 = smul.addr %s261, 8
        %s263 = scalar_lea.vmem %s0, %s262
        %p264 = pneg %p42
        %p265 = pneg %p39
        %p266 = pneg %p63
        %p267 = pneg %p60
        %p268 = pneg %p84
        %p269 = pneg %p81
        %p270 = pneg %p105
        %p271 = pneg %p102
        %p272 = pneg %p126
        %p273 = pneg %p123
        %p274 = pneg %p147
        %p275 = pneg %p144
        %p276 = pneg %p168
        %p277 = pneg %p165
        %p278 = pneg %p194
        %p279 = pneg %p191
        %s280 = sand.u32 %s181, 1
        %s281 = scalar_lea.sflag [#allocation3], %s280
        %s282 = sand.u32 %s181, 1
        %s283 = smul.addr %s282, 64
        %s284 = scalar_lea.vmem [#allocation2], %s283
        %s285 = smul.u32 64, %s21
        %s286 = ssub.s32 513, %s285
        %p287 = scmp.lt.s32.totalorder %s286, 64
        %s288 = scalar_select %p287, %s286, 64
        %s289 = smul.u32 128, %s288
        %p290 = scmp.lt.s32.totalorder %s285, 512
        %s291 = scalar_select %p290, %s285, 512
        %s292 = smul.addr %s291, 8
        %s293 = scalar_lea.vmem %s0, %s292
        %s294 = smul.u32 64, %s21
        %s295 = ssub.s32 513, %s294
        %p296 = scmp.lt.s32.totalorder %s295, 64
        %s297 = scalar_select %p296, %s295, 64
        %s298 = smul.u32 128, %s297
        %s299 = smul.u32 4, %s21
        %s300 = ssub.s32 33, %s299
        %p301 = scmp.lt.s32.totalorder %s300, 4
        %s302 = scalar_select %p301, %s300, 4
        %s303 = smul.u32 256, %s302
        %v305 = vld [vmem:[%s1] sm:$0xf]
        %v306 = vld [vmem:[%s1 + $0x4] sm:$0xf]
        %v307 = vld [vmem:[%s1 + $0x8] sm:$0xf]
        %v308 = vld [vmem:[%s1 + $0xc] sm:$0xf]
        %v309 = vld [vmem:[%s1 + $0x10] sm:$0xf]
        %v310 = vld [vmem:[%s1 + $0x14] sm:$0xf]
        %v311 = vld [vmem:[%s1 + $0x18] sm:$0xf]
        %v312 = vld [vmem:[%s1 + $0x1c] sm:$0xf]
        %v313 = vld [vmem:[%s3] sm:$0xf]
        %v314 = vld [vmem:[%s3 + $0x4] sm:$0xf]
        %v315 = vld [vmem:[%s3 + $0x8] sm:$0xf]
        %v316 = vld [vmem:[%s3 + $0xc] sm:$0xf]
        %v317 = vld [vmem:[%s3 + $0x10] sm:$0xf]
        %v318 = vld [vmem:[%s3 + $0x14] sm:$0xf]
        %v319 = vld [vmem:[%s3 + $0x18] sm:$0xf]
        %v320 = vld [vmem:[%s3 + $0x1c] sm:$0xf]
        %v321 = vld [vmem:[%s5] sm:$0xf]
        %v322 = vld [vmem:[%s5 + $0x4] sm:$0xf]
        %v323 = vld [vmem:[%s2] sm:$0xff]
        %v324 = vld [vmem:[%s2 + $0x8] sm:$0xff]
        %v325 = vld [vmem:[%s2 + $0x10] sm:$0xff]
        %v326 = vld [vmem:[%s2 + $0x18] sm:$0xff]
        %v327 = vld [vmem:[%s2 + $0x20] sm:$0xff]
        %v328 = vld [vmem:[%s2 + $0x28] sm:$0xff]
        %v329 = vld [vmem:[%s2 + $0x30] sm:$0xff]
        %v330 = vld [vmem:[%s2 + $0x38] sm:$0xff]
        %v331 = vld [vmem:[%s4] sm:$0xff]
        %v332 = vld [vmem:[%s4 + $0x8] sm:$0xff]
        %v333 = vld [vmem:[%s4 + $0x10] sm:$0xff]
        %v334 = vld [vmem:[%s4 + $0x18] sm:$0xff]
        %v335 = vld [vmem:[%s4 + $0x20] sm:$0xff]
        %v336 = vld [vmem:[%s4 + $0x28] sm:$0xff]
        %v337 = vld [vmem:[%s4 + $0x30] sm:$0xff]
        %v338 = vld [vmem:[%s4 + $0x38] sm:$0xff]
        %v339 = vld [vmem:[%s6] sm:$0xff]
        %v340 = vld [vmem:[%s6 + $0x8] sm:$0xff]
        %v341 = vld [vmem:[%s293] sm:$0xff]
        %v342 = vld [vmem:[%s293 + $0x8] sm:$0xff]
        %v343 = vld [vmem:[%s293 + $0x10] sm:$0xff]
        %v344 = vld [vmem:[%s293 + $0x18] sm:$0xff]
        %v345 = vld [vmem:[%s293 + $0x20] sm:$0xff]
        %v346 = vld [vmem:[%s293 + $0x28] sm:$0xff]
        %v347 = vld [vmem:[%s293 + $0x30] sm:$0xff]
        %v348 = vld [vmem:[%s293 + $0x38] sm:$0xff]
        %v349 = vld [vmem:[%s293 + $0x40] sm:$0xff]
        %v350 = vld [vmem:[%s293 + $0x48] sm:$0xff]
        %v351 = vld [vmem:[%s293 + $0x50] sm:$0xff]
        %v352 = vld [vmem:[%s293 + $0x58] sm:$0xff]
        %v353 = vld [vmem:[%s293 + $0x60] sm:$0xff]
        %v354 = vld [vmem:[%s293 + $0x68] sm:$0xff]
        %v355 = vld [vmem:[%s293 + $0x70] sm:$0xff]
        %v356 = vld [vmem:[%s293 + $0x78] sm:$0xff]
        %v357 = vld [vmem:[%s293 + $0x80] sm:$0xff]
        %v358 = vld [vmem:[%s293 + $0x88] sm:$0xff]
        %v359 = vld [vmem:[%s293 + $0x90] sm:$0xff]
        %v360 = vld [vmem:[%s293 + $0x98] sm:$0xff]
        %v361 = vld [vmem:[%s293 + $0xa0] sm:$0xff]
        %v362 = vld [vmem:[%s293 + $0xa8] sm:$0xff]
        %v363 = vld [vmem:[%s293 + $0xb0] sm:$0xff]
        %v364 = vld [vmem:[%s293 + $0xb8] sm:$0xff]
        %v365 = vld [vmem:[%s293 + $0xc0] sm:$0xff]
        %v366 = vld [vmem:[%s293 + $0xc8] sm:$0xff]
        %v367 = vld [vmem:[%s293 + $0xd0] sm:$0xff]
        %v368 = vld [vmem:[%s293 + $0xd8] sm:$0xff]
        %v369 = vld [vmem:[%s293 + $0xe0] sm:$0xff]
        %v370 = vld [vmem:[%s293 + $0xe8] sm:$0xff]
        %v371 = vld [vmem:[%s293 + $0xf0] sm:$0xff]
        %v372 = vld [vmem:[%s293 + $0xf8] sm:$0xff]
        %v373 = vld [vmem:[%s293 + $0x100] sm:$0xff]
        %v374 = vld [vmem:[%s293 + $0x108] sm:$0xff]
        %v375 = vld [vmem:[%s293 + $0x110] sm:$0xff]
        %v376 = vld [vmem:[%s293 + $0x118] sm:$0xff]
        %v377 = vld [vmem:[%s293 + $0x120] sm:$0xff]
        %v378 = vld [vmem:[%s293 + $0x128] sm:$0xff]
        %v379 = vld [vmem:[%s293 + $0x130] sm:$0xff]
        %v380 = vld [vmem:[%s293 + $0x138] sm:$0xff]
        %v381 = vld [vmem:[%s293 + $0x140] sm:$0xff]
        %v382 = vld [vmem:[%s293 + $0x148] sm:$0xff]
        %v383 = vld [vmem:[%s293 + $0x150] sm:$0xff]
        %v384 = vld [vmem:[%s293 + $0x158] sm:$0xff]
        %v385 = vld [vmem:[%s293 + $0x160] sm:$0xff]
        %v386 = vld [vmem:[%s293 + $0x168] sm:$0xff]
        %v387 = vld [vmem:[%s293 + $0x170] sm:$0xff]
        %v388 = vld [vmem:[%s293 + $0x178] sm:$0xff]
        %v389 = vld [vmem:[%s293 + $0x180] sm:$0xff]
        %v390 = vld [vmem:[%s293 + $0x188] sm:$0xff]
        %v391 = vld [vmem:[%s293 + $0x190] sm:$0xff]
        %v392 = vld [vmem:[%s293 + $0x198] sm:$0xff]
        %v393 = vld [vmem:[%s293 + $0x1a0] sm:$0xff]
        %v394 = vld [vmem:[%s293 + $0x1a8] sm:$0xff]
        %v395 = vld [vmem:[%s293 + $0x1b0] sm:$0xff]
        %v396 = vld [vmem:[%s293 + $0x1b8] sm:$0xff]
        %v397 = vld [vmem:[%s293 + $0x1c0] sm:$0xff]
        %v398 = vld [vmem:[%s293 + $0x1c8] sm:$0xff]
        %v399 = vld [vmem:[%s293 + $0x1d0] sm:$0xff]
        %v400 = vld [vmem:[%s293 + $0x1d8] sm:$0xff]
        %v401 = vld [vmem:[%s293 + $0x1e0] sm:$0xff]
        %v402 = vld [vmem:[%s293 + $0x1e8] sm:$0xff]
        %v403 = vld [vmem:[%s293 + $0x1f0] sm:$0xff]
        %v404 = vld [vmem:[%s293 + $0x1f8] sm:$0xff]
        %v405 = vpack.c.bf16 %v342, %v341
        %v406 = vpack.c.bf16 %v344, %v343
        %v407 = vpack.c.bf16 %v346, %v345
        %v408 = vpack.c.bf16 %v348, %v347
        %v409 = vpack.c.bf16 %v350, %v349
        %v410 = vpack.c.bf16 %v352, %v351
        %v411 = vpack.c.bf16 %v354, %v353
        %v412 = vpack.c.bf16 %v356, %v355
        %v413 = vpack.c.bf16 %v358, %v357
        %v414 = vpack.c.bf16 %v360, %v359
        %v415 = vpack.c.bf16 %v362, %v361
        %v416 = vpack.c.bf16 %v364, %v363
        %v417 = vpack.c.bf16 %v366, %v365
        %v418 = vpack.c.bf16 %v368, %v367
        %v419 = vpack.c.bf16 %v370, %v369
        %v420 = vpack.c.bf16 %v372, %v371
        %v421 = vpack.c.bf16 %v374, %v373
        %v422 = vpack.c.bf16 %v376, %v375
        %v423 = vpack.c.bf16 %v378, %v377
        %v424 = vpack.c.bf16 %v380, %v379
        %v425 = vpack.c.bf16 %v382, %v381
        %v426 = vpack.c.bf16 %v384, %v383
        %v427 = vpack.c.bf16 %v386, %v385
        %v428 = vpack.c.bf16 %v388, %v387
        %v429 = vpack.c.bf16 %v390, %v389
        %v430 = vpack.c.bf16 %v392, %v391
        %v431 = vpack.c.bf16 %v394, %v393
        %v432 = vpack.c.bf16 %v396, %v395
        %v433 = vpack.c.bf16 %v398, %v397
        %v434 = vpack.c.bf16 %v400, %v399
        %v435 = vpack.c.bf16 %v402, %v401
        %v436 = vpack.c.bf16 %v404, %v403
        %438 = vset.pattern.permute.xlu0 0
        %439 = vperm.xlu0 %438, %v323
        %v440 = vpop.permute.xlu0 %439
        %443 = vset.pattern.permute.xlu0 0
        %444 = vperm.xlu0 %443, %v324
        %v445 = vpop.permute.xlu0 %444
        %448 = vset.pattern.permute.xlu0 0
        %449 = vperm.xlu0 %448, %v325
        %v450 = vpop.permute.xlu0 %449
        %453 = vset.pattern.permute.xlu0 0
        %454 = vperm.xlu0 %453, %v326
        %v455 = vpop.permute.xlu0 %454
        %458 = vset.pattern.permute.xlu0 0
        %459 = vperm.xlu0 %458, %v327
        %v460 = vpop.permute.xlu0 %459
        %463 = vset.pattern.permute.xlu0 0
        %464 = vperm.xlu0 %463, %v328
        %v465 = vpop.permute.xlu0 %464
        %468 = vset.pattern.permute.xlu0 0
        %469 = vperm.xlu0 %468, %v329
        %v470 = vpop.permute.xlu0 %469
        %473 = vset.pattern.permute.xlu0 0
        %474 = vperm.xlu0 %473, %v330
        %v475 = vpop.permute.xlu0 %474
        %v485 = vunpack.c.l.b16 %v305
        %v486 = vunpack.c.l.b16 %v306
        %v487 = vunpack.c.l.b16 %v307
        %v488 = vunpack.c.l.b16 %v308
        %v489 = vunpack.c.l.b16 %v309
        %v490 = vunpack.c.l.b16 %v310
        %v491 = vunpack.c.l.b16 %v311
        %v492 = vunpack.c.l.b16 %v312
        %v493 = vpack.c.b16 %v486, %v485
        %v494 = vpack.c.b16 %v488, %v487
        %v495 = vpack.c.b16 %v490, %v489
        %v496 = vpack.c.b16 %v492, %v491
        %vm497 = vcmask 261120
        %v499 = vsel %vm497, %v493, 0
        %v502 = vsel %vm497, %v494, 0
        %v505 = vsel %vm497, %v495, 0
        %v508 = vsel %vm497, %v496, 0
        %v511 = vsel %vm497, %v405, 0
        %v514 = vsel %vm497, %v406, 0
        %v517 = vsel %vm497, %v407, 0
        %v520 = vsel %vm497, %v408, 0
        %v523 = vsel %vm497, %v409, 0
        %v526 = vsel %vm497, %v410, 0
        %v529 = vsel %vm497, %v411, 0
        %v532 = vsel %vm497, %v412, 0
        %v535 = vsel %vm497, %v413, 0
        %v538 = vsel %vm497, %v414, 0
        %v541 = vsel %vm497, %v415, 0
        %v544 = vsel %vm497, %v416, 0
        %v547 = vsel %vm497, %v417, 0
        %v550 = vsel %vm497, %v418, 0
        %v553 = vsel %vm497, %v419, 0
        %v556 = vsel %vm497, %v420, 0
        %v559 = vsel %vm497, %v421, 0
        %v562 = vsel %vm497, %v422, 0
        %v565 = vsel %vm497, %v423, 0
        %v568 = vsel %vm497, %v424, 0
        %v571 = vsel %vm497, %v425, 0
        %v574 = vsel %vm497, %v426, 0
        %v577 = vsel %vm497, %v427, 0
        %v580 = vsel %vm497, %v428, 0
        %v583 = vsel %vm497, %v429, 0
        %v586 = vsel %vm497, %v430, 0
        %v589 = vsel %vm497, %v431, 0
        %v592 = vsel %vm497, %v432, 0
        %v595 = vsel %vm497, %v433, 0
        %v598 = vsel %vm497, %v434, 0
        %v601 = vsel %vm497, %v435, 0
        %v604 = vsel %vm497, %v436, 0
        %606 = vmatprep.subr.bf16.mxu0 0
        %607 = vmatpush1.bf16.xpose.msra.mxu0 %v511
        %608 = vmatprep.subr.bf16.mxu0 0
        %609 = vmatpush1.bf16.xpose.msra.mxu0 %v514
        %610 = vmatprep.subr.bf16.mxu0 0
        %611 = vmatpush1.bf16.xpose.msra.mxu0 %v517
        %612 = vmatprep.subr.bf16.mxu0 0
        %613 = vmatpush1.bf16.xpose.msra.mxu0 %v520
        %614 = vmatprep.subr.bf16.mxu0 0
        %615 = vmatpush1.bf16.xpose.msra.mxu0 %v523
        %616 = vmatprep.subr.bf16.mxu0 0
        %617 = vmatpush1.bf16.xpose.msra.mxu0 %v526
        %618 = vmatprep.subr.bf16.mxu0 0
        %619 = vmatpush1.bf16.xpose.msra.mxu0 %v529
        %620 = vmatprep.subr.bf16.mxu0 0
        %621 = vmatpush1.bf16.xpose.msra.mxu0 %v532
        %622 = vmatprep.subr.bf16.mxu0 0
        %623 = vmatpush1.bf16.xpose.msra.mxu0 %v535
        %624 = vmatprep.subr.bf16.mxu0 0
        %625 = vmatpush1.bf16.xpose.msra.mxu0 %v538
        %626 = vmatprep.subr.bf16.mxu0 0
        %627 = vmatpush1.bf16.xpose.msra.mxu0 %v541
        %628 = vmatprep.subr.bf16.mxu0 0
        %629 = vmatpush1.bf16.xpose.msra.mxu0 %v544
        %630 = vmatprep.subr.bf16.mxu0 0
        %631 = vmatpush1.bf16.xpose.msra.mxu0 %v547
        %632 = vmatprep.subr.bf16.mxu0 0
        %633 = vmatpush1.bf16.xpose.msra.mxu0 %v550
        %634 = vmatprep.subr.bf16.mxu0 0
        %635 = vmatpush1.bf16.xpose.msra.mxu0 %v553
        %636 = vmatprep.subr.bf16.mxu0 0
        %637 = vmatpush1.bf16.xpose.msra.mxu0 %v556
        %638 = vmatprep.mubr.bf16.mxu0 0
        %639 = vmatmul.mubr.bf16.gmra.mrb[0].mxu0 %v499
        %v640 = vpop.f32.mrb[0].mxu0
        %v641 = vadd.f32 %v440, %v640
        %v642 = vpop.f32.mrb[0].mxu0
        %v643 = vadd.f32 %v440, %v642
        %v644 = vpop.f32.mrb[0].mxu0
        %v645 = vadd.f32 %v445, %v644
        %v646 = vpop.f32.mrb[0].mxu0
        %v647 = vadd.f32 %v445, %v646
        %648 = vmatprep.mubr.bf16.mxu0 0
        %649 = vmatmul.mubr.bf16.gmra.mrb[0].mxu0 %v502
        %v650 = vpop.f32.mrb[0].mxu0
        %v651 = vadd.f32 %v450, %v650
        %v652 = vpop.f32.mrb[0].mxu0
        %v653 = vadd.f32 %v450, %v652
        %v654 = vpop.f32.mrb[0].mxu0
        %v655 = vadd.f32 %v455, %v654
        %v656 = vpop.f32.mrb[0].mxu0
        %v657 = vadd.f32 %v455, %v656
        %658 = vmatprep.mubr.bf16.mxu0 0
        %659 = vmatmul.mubr.bf16.gmra.mrb[0].mxu0 %v505
        %v660 = vpop.f32.mrb[0].mxu0
        %v661 = vadd.f32 %v460, %v660
        %v662 = vpop.f32.mrb[0].mxu0
        %v663 = vadd.f32 %v460, %v662
        %v664 = vpop.f32.mrb[0].mxu0
        %v665 = vadd.f32 %v465, %v664
        %v666 = vpop.f32.mrb[0].mxu0
        %v667 = vadd.f32 %v465, %v666
        %668 = vmatprep.mubr.bf16.mxu0 0
        %669 = vmatmul.mubr.bf16.gmra.mrb[0].mxu0 %v508
        %v670 = vpop.f32.mrb[0].mxu0
        %v671 = vadd.f32 %v470, %v670
        %v672 = vpop.f32.mrb[0].mxu0
        %v673 = vadd.f32 %v470, %v672
        %v674 = vpop.f32.mrb[0].mxu0
        %v675 = vadd.f32 %v475, %v674
        %v676 = vpop.f32.mrb[0].mxu0
        %v677 = vadd.f32 %v475, %v676
        %678 = vdwg.mxu0
        %679 = vmatprep.subr.bf16.mxu0 0
        %680 = vmatpush1.bf16.xpose.msra.mxu0 %v559
        %681 = vmatprep.subr.bf16.mxu0 0
        %682 = vmatpush1.bf16.xpose.msra.mxu0 %v562
        %683 = vmatprep.subr.bf16.mxu0 0
        %684 = vmatpush1.bf16.xpose.msra.mxu0 %v565
        %685 = vmatprep.subr.bf16.mxu0 0
        %686 = vmatpush1.bf16.xpose.msra.mxu0 %v568
        %687 = vmatprep.subr.bf16.mxu0 0
        %688 = vmatpush1.bf16.xpose.msra.mxu0 %v571
        %689 = vmatprep.subr.bf16.mxu0 0
        %690 = vmatpush1.bf16.xpose.msra.mxu0 %v574
        %691 = vmatprep.subr.bf16.mxu0 0
        %692 = vmatpush1.bf16.xpose.msra.mxu0 %v577
        %693 = vmatprep.subr.bf16.mxu0 0
        %694 = vmatpush1.bf16.xpose.msra.mxu0 %v580
        %695 = vmatprep.subr.bf16.mxu0 0
        %696 = vmatpush1.bf16.xpose.msra.mxu0 %v583
        %697 = vmatprep.subr.bf16.mxu0 0
        %698 = vmatpush1.bf16.xpose.msra.mxu0 %v586
        %699 = vmatprep.subr.bf16.mxu0 0
        %700 = vmatpush1.bf16.xpose.msra.mxu0 %v589
        %701 = vmatprep.subr.bf16.mxu0 0
        %702 = vmatpush1.bf16.xpose.msra.mxu0 %v592
        %703 = vmatprep.subr.bf16.mxu0 0
        %704 = vmatpush1.bf16.xpose.msra.mxu0 %v595
        %705 = vmatprep.subr.bf16.mxu0 0
        %706 = vmatpush1.bf16.xpose.msra.mxu0 %v598
        %707 = vmatprep.subr.bf16.mxu0 0
        %708 = vmatpush1.bf16.xpose.msra.mxu0 %v601
        %709 = vmatprep.subr.bf16.mxu0 0
        %710 = vmatpush1.bf16.xpose.msra.mxu0 %v604
        %711 = vmatprep.mubr.bf16.mxu0 0
        %712 = vmatmul.mubr.bf16.gmra.mrb[0].mxu0 %v499
        %v713 = vpop.f32.mrb[0].mxu0
        %v714 = vadd.f32 %v440, %v713
        %v715 = vpop.f32.mrb[0].mxu0
        %v716 = vadd.f32 %v440, %v715
        %v717 = vpop.f32.mrb[0].mxu0
        %v718 = vadd.f32 %v445, %v717
        %v719 = vpop.f32.mrb[0].mxu0
        %v720 = vadd.f32 %v445, %v719
        %721 = vmatprep.mubr.bf16.mxu0 0
        %722 = vmatmul.mubr.bf16.gmra.mrb[0].mxu0 %v502
        %v723 = vpop.f32.mrb[0].mxu0
        %v724 = vadd.f32 %v450, %v723
        %v725 = vpop.f32.mrb[0].mxu0
        %v726 = vadd.f32 %v450, %v725
        %v727 = vpop.f32.mrb[0].mxu0
        %v728 = vadd.f32 %v455, %v727
        %v729 = vpop.f32.mrb[0].mxu0
        %v730 = vadd.f32 %v455, %v729
        %731 = vmatprep.mubr.bf16.mxu0 0
        %732 = vmatmul.mubr.bf16.gmra.mrb[0].mxu0 %v505
        %v733 = vpop.f32.mrb[0].mxu0
        %v734 = vadd.f32 %v460, %v733
        %v735 = vpop.f32.mrb[0].mxu0
        %v736 = vadd.f32 %v460, %v735
        %v737 = vpop.f32.mrb[0].mxu0
        %v738 = vadd.f32 %v465, %v737
        %v739 = vpop.f32.mrb[0].mxu0
        %v740 = vadd.f32 %v465, %v739
        %741 = vmatprep.mubr.bf16.mxu0 0
        %742 = vmatmul.mubr.bf16.gmra.mrb[0].mxu0 %v508
        %v743 = vpop.f32.mrb[0].mxu0
        %v744 = vadd.f32 %v470, %v743
        %v745 = vpop.f32.mrb[0].mxu0
        %v746 = vadd.f32 %v470, %v745
        %v747 = vpop.f32.mrb[0].mxu0
        %v748 = vadd.f32 %v475, %v747
        %v749 = vpop.f32.mrb[0].mxu0
        %v750 = vadd.f32 %v475, %v749
        %751 = vdwg.mxu0
        %v752 = vmax.f32 %v641, 0.0
        %v753 = vmax.f32 %v643, 0.0
        %v754 = vmax.f32 %v714, 0.0
        %v755 = vmax.f32 %v716, 0.0
        %v756 = vmax.f32 %v645, 0.0
        %v757 = vmax.f32 %v647, 0.0
        %v758 = vmax.f32 %v718, 0.0
        %v759 = vmax.f32 %v720, 0.0
        %v760 = vmax.f32 %v651, 0.0
        %v761 = vmax.f32 %v653, 0.0
        %v762 = vmax.f32 %v724, 0.0
        %v763 = vmax.f32 %v726, 0.0
        %v764 = vmax.f32 %v655, 0.0
        %v765 = vmax.f32 %v657, 0.0
        %v766 = vmax.f32 %v728, 0.0
        %v767 = vmax.f32 %v730, 0.0
        %v768 = vmax.f32 %v661, 0.0
        %v769 = vmax.f32 %v663, 0.0
        %v770 = vmax.f32 %v734, 0.0
        %v771 = vmax.f32 %v736, 0.0
        %v772 = vmax.f32 %v665, 0.0
        %v773 = vmax.f32 %v667, 0.0
        %v774 = vmax.f32 %v738, 0.0
        %v775 = vmax.f32 %v740, 0.0
        %v776 = vmax.f32 %v671, 0.0
        %v777 = vmax.f32 %v673, 0.0
        %v778 = vmax.f32 %v744, 0.0
        %v779 = vmax.f32 %v746, 0.0
        %v780 = vmax.f32 %v675, 0.0
        %v781 = vmax.f32 %v677, 0.0
        %v782 = vmax.f32 %v748, 0.0
        %v783 = vmax.f32 %v750, 0.0
        %v784 = vpack.c.bf16 %v756, %v752
        %v785 = vpack.c.bf16 %v757, %v753
        %v786 = vpack.c.bf16 %v758, %v754
        %v787 = vpack.c.bf16 %v759, %v755
        %v788 = vpack.c.bf16 %v764, %v760
        %v789 = vpack.c.bf16 %v765, %v761
        %v790 = vpack.c.bf16 %v766, %v762
        %v791 = vpack.c.bf16 %v767, %v763
        %v792 = vpack.c.bf16 %v772, %v768
        %v793 = vpack.c.bf16 %v773, %v769
        %v794 = vpack.c.bf16 %v774, %v770
        %v795 = vpack.c.bf16 %v775, %v771
        %v796 = vpack.c.bf16 %v780, %v776
        %v797 = vpack.c.bf16 %v781, %v777
        %v798 = vpack.c.bf16 %v782, %v778
        %v799 = vpack.c.bf16 %v783, %v779
        %801 = vset.pattern.permute.xlu0 0
        %802 = vperm.xlu0 %801, %v331
        %v803 = vpop.permute.xlu0 %802
        %806 = vset.pattern.permute.xlu0 0
        %807 = vperm.xlu0 %806, %v332
        %v808 = vpop.permute.xlu0 %807
        %811 = vset.pattern.permute.xlu0 0
        %812 = vperm.xlu0 %811, %v333
        %v813 = vpop.permute.xlu0 %812
        %816 = vset.pattern.permute.xlu0 0
        %817 = vperm.xlu0 %816, %v334
        %v818 = vpop.permute.xlu0 %817
        %821 = vset.pattern.permute.xlu0 0
        %822 = vperm.xlu0 %821, %v335
        %v823 = vpop.permute.xlu0 %822
        %826 = vset.pattern.permute.xlu0 0
        %827 = vperm.xlu0 %826, %v336
        %v828 = vpop.permute.xlu0 %827
        %831 = vset.pattern.permute.xlu0 0
        %832 = vperm.xlu0 %831, %v337
        %v833 = vpop.permute.xlu0 %832
        %836 = vset.pattern.permute.xlu0 0
        %837 = vperm.xlu0 %836, %v338
        %v838 = vpop.permute.xlu0 %837
        %v848 = vunpack.c.l.b16 %v313
        %v849 = vunpack.c.l.b16 %v314
        %v850 = vunpack.c.l.b16 %v315
        %v851 = vunpack.c.l.b16 %v316
        %v852 = vunpack.c.l.b16 %v317
        %v853 = vunpack.c.l.b16 %v318
        %v854 = vunpack.c.l.b16 %v319
        %v855 = vunpack.c.l.b16 %v320
        %v856 = vpack.c.b16 %v849, %v848
        %v857 = vpack.c.b16 %v851, %v850
        %v858 = vpack.c.b16 %v853, %v852
        %v859 = vpack.c.b16 %v855, %v854
        %vm860 = vcmask 523264
        %v862 = vsel %vm860, %v856, 0
        %v865 = vsel %vm860, %v857, 0
        %v868 = vsel %vm860, %v858, 0
        %v871 = vsel %vm860, %v859, 0
        %873 = vmatprep.subr.bf16.mxu0 %v785
        %874 = vmatpush1.bf16.msra.mxu0 %v784
        %875 = vmatprep.subr.bf16.mxu0 %v789
        %876 = vmatpush1.bf16.msra.mxu0 %v788
        %877 = vmatprep.subr.bf16.mxu0 %v793
        %878 = vmatpush1.bf16.msra.mxu0 %v792
        %879 = vmatprep.subr.bf16.mxu0 %v797
        %880 = vmatpush1.bf16.msra.mxu0 %v796
        %881 = vmatprep.subr.bf16.mxu0 0
        %882 = vmatpush1.bf16.msra.mxu0 0
        %883 = vmatprep.subr.bf16.mxu0 0
        %884 = vmatpush1.bf16.msra.mxu0 0
        %885 = vmatprep.subr.bf16.mxu0 0
        %886 = vmatpush1.bf16.msra.mxu0 0
        %887 = vmatprep.subr.bf16.mxu0 0
        %888 = vmatpush1.bf16.msra.mxu0 0
        %889 = vmatprep.subr.bf16.mxu0 0
        %890 = vmatpush1.bf16.msra.mxu0 0
        %891 = vmatprep.subr.bf16.mxu0 0
        %892 = vmatpush1.bf16.msra.mxu0 0
        %893 = vmatprep.subr.bf16.mxu0 0
        %894 = vmatpush1.bf16.msra.mxu0 0
        %895 = vmatprep.subr.bf16.mxu0 0
        %896 = vmatpush1.bf16.msra.mxu0 0
        %897 = vmatprep.subr.bf16.mxu0 0
        %898 = vmatpush1.bf16.msra.mxu0 0
        %899 = vmatprep.subr.bf16.mxu0 0
        %900 = vmatpush1.bf16.msra.mxu0 0
        %901 = vmatprep.subr.bf16.mxu0 0
        %902 = vmatpush1.bf16.msra.mxu0 0
        %903 = vmatprep.subr.bf16.mxu0 0
        %904 = vmatpush1.bf16.msra.mxu0 0
        %905 = vmatprep.mubr.bf16.mxu0 0
        %906 = vmatmul.mubr.bf16.gmra.mrb[0].mxu0 %v862
        %v907 = vpop.f32.mrb[0].mxu0
        %v908 = vadd.f32 %v803, %v907
        %v909 = vpop.f32.mrb[0].mxu0
        %v910 = vadd.f32 %v803, %v909
        %v911 = vpop.f32.mrb[0].mxu0
        %v912 = vadd.f32 %v808, %v911
        %v913 = vpop.f32.mrb[0].mxu0
        %v914 = vadd.f32 %v808, %v913
        %915 = vmatprep.mubr.bf16.mxu0 0
        %916 = vmatmul.mubr.bf16.gmra.mrb[0].mxu0 %v865
        %v917 = vpop.f32.mrb[0].mxu0
        %v918 = vadd.f32 %v813, %v917
        %v919 = vpop.f32.mrb[0].mxu0
        %v920 = vadd.f32 %v813, %v919
        %v921 = vpop.f32.mrb[0].mxu0
        %v922 = vadd.f32 %v818, %v921
        %v923 = vpop.f32.mrb[0].mxu0
        %v924 = vadd.f32 %v818, %v923
        %925 = vmatprep.mubr.bf16.mxu0 0
        %926 = vmatmul.mubr.bf16.gmra.mrb[0].mxu0 %v868
        %v927 = vpop.f32.mrb[0].mxu0
        %v928 = vadd.f32 %v823, %v927
        %v929 = vpop.f32.mrb[0].mxu0
        %v930 = vadd.f32 %v823, %v929
        %v931 = vpop.f32.mrb[0].mxu0
        %v932 = vadd.f32 %v828, %v931
        %v933 = vpop.f32.mrb[0].mxu0
        %v934 = vadd.f32 %v828, %v933
        %935 = vmatprep.mubr.bf16.mxu0 0
        %936 = vmatmul.mubr.bf16.gmra.mrb[0].mxu0 %v871
        %v937 = vpop.f32.mrb[0].mxu0
        %v938 = vadd.f32 %v833, %v937
        %v939 = vpop.f32.mrb[0].mxu0
        %v940 = vadd.f32 %v833, %v939
        %v941 = vpop.f32.mrb[0].mxu0
        %v942 = vadd.f32 %v838, %v941
        %v943 = vpop.f32.mrb[0].mxu0
        %v944 = vadd.f32 %v838, %v943
        %945 = vdwg.mxu0
        %946 = vmatprep.subr.bf16.mxu0 %v787
        %947 = vmatpush1.bf16.msra.mxu0 %v786
        %948 = vmatprep.subr.bf16.mxu0 %v791
        %949 = vmatpush1.bf16.msra.mxu0 %v790
        %950 = vmatprep.subr.bf16.mxu0 %v795
        %951 = vmatpush1.bf16.msra.mxu0 %v794
        %952 = vmatprep.subr.bf16.mxu0 %v799
        %953 = vmatpush1.bf16.msra.mxu0 %v798
        %954 = vmatprep.subr.bf16.mxu0 0
        %955 = vmatpush1.bf16.msra.mxu0 0
        %956 = vmatprep.subr.bf16.mxu0 0
        %957 = vmatpush1.bf16.msra.mxu0 0
        %958 = vmatprep.subr.bf16.mxu0 0
        %959 = vmatpush1.bf16.msra.mxu0 0
        %960 = vmatprep.subr.bf16.mxu0 0
        %961 = vmatpush1.bf16.msra.mxu0 0
        %962 = vmatprep.subr.bf16.mxu0 0
        %963 = vmatpush1.bf16.msra.mxu0 0
        %964 = vmatprep.subr.bf16.mxu0 0
        %965 = vmatpush1.bf16.msra.mxu0 0
        %966 = vmatprep.subr.bf16.mxu0 0
        %967 = vmatpush1.bf16.msra.mxu0 0
        %968 = vmatprep.subr.bf16.mxu0 0
        %969 = vmatpush1.bf16.msra.mxu0 0
        %970 = vmatprep.subr.bf16.mxu0 0
        %971 = vmatpush1.bf16.msra.mxu0 0
        %972 = vmatprep.subr.bf16.mxu0 0
        %973 = vmatpush1.bf16.msra.mxu0 0
        %974 = vmatprep.subr.bf16.mxu0 0
        %975 = vmatpush1.bf16.msra.mxu0 0
        %976 = vmatprep.subr.bf16.mxu0 0
        %977 = vmatpush1.bf16.msra.mxu0 0
        %978 = vmatprep.mubr.bf16.mxu0 0
        %979 = vmatmul.mubr.bf16.gmra.mrb[0].mxu0 %v862
        %v980 = vpop.f32.mrb[0].mxu0
        %v981 = vadd.f32 %v803, %v980
        %v982 = vpop.f32.mrb[0].mxu0
        %v983 = vadd.f32 %v803, %v982
        %v984 = vpop.f32.mrb[0].mxu0
        %v985 = vadd.f32 %v808, %v984
        %v986 = vpop.f32.mrb[0].mxu0
        %v987 = vadd.f32 %v808, %v986
        %988 = vmatprep.mubr.bf16.mxu0 0
        %989 = vmatmul.mubr.bf16.gmra.mrb[0].mxu0 %v865
        %v990 = vpop.f32.mrb[0].mxu0
        %v991 = vadd.f32 %v813, %v990
        %v992 = vpop.f32.mrb[0].mxu0
        %v993 = vadd.f32 %v813, %v992
        %v994 = vpop.f32.mrb[0].mxu0
        %v995 = vadd.f32 %v818, %v994
        %v996 = vpop.f32.mrb[0].mxu0
        %v997 = vadd.f32 %v818, %v996
        %998 = vmatprep.mubr.bf16.mxu0 0
        %999 = vmatmul.mubr.bf16.gmra.mrb[0].mxu0 %v868
        %v1000 = vpop.f32.mrb[0].mxu0
        %v1001 = vadd.f32 %v823, %v1000
        %v1002 = vpop.f32.mrb[0].mxu0
        %v1003 = vadd.f32 %v823, %v1002
        %v1004 = vpop.f32.mrb[0].mxu0
        %v1005 = vadd.f32 %v828, %v1004
        %v1006 = vpop.f32.mrb[0].mxu0
        %v1007 = vadd.f32 %v828, %v1006
        %1008 = vmatprep.mubr.bf16.mxu0 0
        %1009 = vmatmul.mubr.bf16.gmra.mrb[0].mxu0 %v871
        %v1010 = vpop.f32.mrb[0].mxu0
        %v1011 = vadd.f32 %v833, %v1010
        %v1012 = vpop.f32.mrb[0].mxu0
        %v1013 = vadd.f32 %v833, %v1012
        %v1014 = vpop.f32.mrb[0].mxu0
        %v1015 = vadd.f32 %v838, %v1014
        %v1016 = vpop.f32.mrb[0].mxu0
        %v1017 = vadd.f32 %v838, %v1016
        %1018 = vdwg.mxu0
        %v1019 = vmax.f32 %v908, 0.0
        %v1020 = vmax.f32 %v910, 0.0
        %v1021 = vmax.f32 %v981, 0.0
        %v1022 = vmax.f32 %v983, 0.0
        %v1023 = vmax.f32 %v912, 0.0
        %v1024 = vmax.f32 %v914, 0.0
        %v1025 = vmax.f32 %v985, 0.0
        %v1026 = vmax.f32 %v987, 0.0
        %v1027 = vmax.f32 %v918, 0.0
        %v1028 = vmax.f32 %v920, 0.0
        %v1029 = vmax.f32 %v991, 0.0
        %v1030 = vmax.f32 %v993, 0.0
        %v1031 = vmax.f32 %v922, 0.0
        %v1032 = vmax.f32 %v924, 0.0
        %v1033 = vmax.f32 %v995, 0.0
        %v1034 = vmax.f32 %v997, 0.0
        %v1035 = vmax.f32 %v928, 0.0
        %v1036 = vmax.f32 %v930, 0.0
        %v1037 = vmax.f32 %v1001, 0.0
        %v1038 = vmax.f32 %v1003, 0.0
        %v1039 = vmax.f32 %v932, 0.0
        %v1040 = vmax.f32 %v934, 0.0
        %v1041 = vmax.f32 %v1005, 0.0
        %v1042 = vmax.f32 %v1007, 0.0
        %v1043 = vmax.f32 %v938, 0.0
        %v1044 = vmax.f32 %v940, 0.0
        %v1045 = vmax.f32 %v1011, 0.0
        %v1046 = vmax.f32 %v1013, 0.0
        %v1047 = vmax.f32 %v942, 0.0
        %v1048 = vmax.f32 %v944, 0.0
        %v1049 = vmax.f32 %v1015, 0.0
        %v1050 = vmax.f32 %v1017, 0.0
        %v1051 = vpack.c.bf16 %v1023, %v1019
        %v1052 = vpack.c.bf16 %v1024, %v1020
        %v1053 = vpack.c.bf16 %v1025, %v1021
        %v1054 = vpack.c.bf16 %v1026, %v1022
        %v1055 = vpack.c.bf16 %v1031, %v1027
        %v1056 = vpack.c.bf16 %v1032, %v1028
        %v1057 = vpack.c.bf16 %v1033, %v1029
        %v1058 = vpack.c.bf16 %v1034, %v1030
        %v1059 = vpack.c.bf16 %v1039, %v1035
        %v1060 = vpack.c.bf16 %v1040, %v1036
        %v1061 = vpack.c.bf16 %v1041, %v1037
        %v1062 = vpack.c.bf16 %v1042, %v1038
        %v1063 = vpack.c.bf16 %v1047, %v1043
        %v1064 = vpack.c.bf16 %v1048, %v1044
        %v1065 = vpack.c.bf16 %v1049, %v1045
        %v1066 = vpack.c.bf16 %v1050, %v1046
        %1068 = vset.pattern.permute.xlu0 0
        %1069 = vperm.xlu0 %1068, %v339
        %v1070 = vpop.permute.xlu0 %1069
        %1073 = vset.pattern.permute.xlu0 0
        %1074 = vperm.xlu0 %1073, %v340
        %v1075 = vpop.permute.xlu0 %1074
        %v1079 = vunpack.c.l.b16 %v321
        %v1080 = vunpack.c.l.b16 %v322
        %v1081 = vpack.c.b16 %v1080, %v1079
        %v1083 = vsel %vm860, %v1081, 0
        %1085 = vmatprep.subr.bf16.mxu0 %v1052
        %1086 = vmatpush1.bf16.msra.mxu0 %v1051
        %1087 = vmatprep.subr.bf16.mxu0 %v1056
        %1088 = vmatpush1.bf16.msra.mxu0 %v1055
        %1089 = vmatprep.subr.bf16.mxu0 %v1060
        %1090 = vmatpush1.bf16.msra.mxu0 %v1059
        %1091 = vmatprep.subr.bf16.mxu0 %v1064
        %1092 = vmatpush1.bf16.msra.mxu0 %v1063
        %1093 = vmatprep.subr.bf16.mxu0 0
        %1094 = vmatpush1.bf16.msra.mxu0 0
        %1095 = vmatprep.subr.bf16.mxu0 0
        %1096 = vmatpush1.bf16.msra.mxu0 0
        %1097 = vmatprep.subr.bf16.mxu0 0
        %1098 = vmatpush1.bf16.msra.mxu0 0
        %1099 = vmatprep.subr.bf16.mxu0 0
        %1100 = vmatpush1.bf16.msra.mxu0 0
        %1101 = vmatprep.subr.bf16.mxu0 0
        %1102 = vmatpush1.bf16.msra.mxu0 0
        %1103 = vmatprep.subr.bf16.mxu0 0
        %1104 = vmatpush1.bf16.msra.mxu0 0
        %1105 = vmatprep.subr.bf16.mxu0 0
        %1106 = vmatpush1.bf16.msra.mxu0 0
        %1107 = vmatprep.subr.bf16.mxu0 0
        %1108 = vmatpush1.bf16.msra.mxu0 0
        %1109 = vmatprep.subr.bf16.mxu0 0
        %1110 = vmatpush1.bf16.msra.mxu0 0
        %1111 = vmatprep.subr.bf16.mxu0 0
        %1112 = vmatpush1.bf16.msra.mxu0 0
        %1113 = vmatprep.subr.bf16.mxu0 0
        %1114 = vmatpush1.bf16.msra.mxu0 0
        %1115 = vmatprep.subr.bf16.mxu0 0
        %1116 = vmatpush1.bf16.msra.mxu0 0
        %1117 = vmatprep.mubr.bf16.mxu0 0
        %1118 = vmatmul.mubr.bf16.gmra.mrb[0].mxu0 %v1083
        %v1119 = vpop.f32.mrb[0].mxu0
        %v1120 = vadd.f32 %v1070, %v1119
        %v1121 = vpop.f32.mrb[0].mxu0
        %v1122 = vadd.f32 %v1070, %v1121
        %v1123 = vpop.f32.mrb[0].mxu0
        %v1124 = vadd.f32 %v1075, %v1123
        %v1125 = vpop.f32.mrb[0].mxu0
        %v1126 = vadd.f32 %v1075, %v1125
        %1127 = vdwg.mxu0
        %1128 = vmatprep.subr.bf16.mxu0 %v1054
        %1129 = vmatpush1.bf16.msra.mxu0 %v1053
        %1130 = vmatprep.subr.bf16.mxu0 %v1058
        %1131 = vmatpush1.bf16.msra.mxu0 %v1057
        %1132 = vmatprep.subr.bf16.mxu0 %v1062
        %1133 = vmatpush1.bf16.msra.mxu0 %v1061
        %1134 = vmatprep.subr.bf16.mxu0 %v1066
        %1135 = vmatpush1.bf16.msra.mxu0 %v1065
        %1136 = vmatprep.subr.bf16.mxu0 0
        %1137 = vmatpush1.bf16.msra.mxu0 0
        %1138 = vmatprep.subr.bf16.mxu0 0
        %1139 = vmatpush1.bf16.msra.mxu0 0
        %1140 = vmatprep.subr.bf16.mxu0 0
        %1141 = vmatpush1.bf16.msra.mxu0 0
        %1142 = vmatprep.subr.bf16.mxu0 0
        %1143 = vmatpush1.bf16.msra.mxu0 0
        %1144 = vmatprep.subr.bf16.mxu0 0
        %1145 = vmatpush1.bf16.msra.mxu0 0
        %1146 = vmatprep.subr.bf16.mxu0 0
        %1147 = vmatpush1.bf16.msra.mxu0 0
        %1148 = vmatprep.subr.bf16.mxu0 0
        %1149 = vmatpush1.bf16.msra.mxu0 0
        %1150 = vmatprep.subr.bf16.mxu0 0
        %1151 = vmatpush1.bf16.msra.mxu0 0
        %1152 = vmatprep.subr.bf16.mxu0 0
        %1153 = vmatpush1.bf16.msra.mxu0 0
        %1154 = vmatprep.subr.bf16.mxu0 0
        %1155 = vmatpush1.bf16.msra.mxu0 0
        %1156 = vmatprep.subr.bf16.mxu0 0
        %1157 = vmatpush1.bf16.msra.mxu0 0
        %1158 = vmatprep.subr.bf16.mxu0 0
        %1159 = vmatpush1.bf16.msra.mxu0 0
        %1160 = vmatprep.mubr.bf16.mxu0 0
        %1161 = vmatmul.mubr.bf16.gmra.mrb[0].mxu0 %v1083
        %v1162 = vpop.f32.mrb[0].mxu0
        %v1163 = vadd.f32 %v1070, %v1162
        %v1164 = vpop.f32.mrb[0].mxu0
        %v1165 = vadd.f32 %v1070, %v1164
        %v1166 = vpop.f32.mrb[0].mxu0
        %v1167 = vadd.f32 %v1075, %v1166
        %v1168 = vpop.f32.mrb[0].mxu0
        %v1169 = vadd.f32 %v1075, %v1168
        %1170 = vdwg.mxu0
        %1171 = vst [vmem:[%s284] sm:$0xff] %v1120
        %1172 = vst [vmem:[%s284 + $0x8] sm:$0xff] %v1122
        %1173 = vst [vmem:[%s284 + $0x10] sm:$0xff] %v1163
        %1174 = vst [vmem:[%s284 + $0x18] sm:$0xff] %v1165
        %1175 = vst [vmem:[%s284 + $0x20] sm:$0xff] %v1124
        %1176 = vst [vmem:[%s284 + $0x28] sm:$0xff] %v1126
        %1177 = vst [vmem:[%s284 + $0x30] sm:$0xff] %v1167
        %1178 = vst [vmem:[%s284 + $0x38] sm:$0xff] %v1169
        %s1179 = sand.u32 %s181, 1
        %s1180 = scalar_lea.sflag [#allocation3], %s1179
        %s1181 = sand.u32 %s181, 1
        %s1182 = smul.addr %s1181, 64
        %s1183 = scalar_lea.vmem [#allocation2], %s1182
        // Predicated region
        $region49: #{tpu_custom_call.1} parent=47 // pred_check
          %p1184 = pneg %p191
        $region50: #{tpu_custom_call.1} parent=47 // pred_check_branch
          %1186 = sbr.rel (%p1184) target = $region52
        $region51: #{tpu_custom_call.1} parent=47 // pred_region
          %s1187 = smul.u32 4, %s21
          %s1188 = ssub.s32 33, %s1187
          %p1189 = scmp.lt.s32.totalorder %s1188, 4
          %s1190 = scalar_select %p1189, %s1188, 4
          %s1191 = smul.u32 256, %s1190
          %s1193 = ssub.s32 1024, %s1191
          %1194 = vsyncadd %s1180, %s1193
          %p1195 = scmp.ne.s32.totalorder 0, %s1191
          %s1196 = smul.addr %s1187, 128
          %s1197 = scalar_lea.hbm %s7, %s1196
          %s1198 = smul.u32 %s1190, 8
          %s1199 = smul.u32 %s1198, 2
          %s1200 = sshll.u32 %s1183, 4
          %s1201 = int_to_ptr.vmem [resolvable:$true] %s1200
          %s1202 = sshll.u32 %s1199, 4
          %1206 = dma.vmem_to_hbm [thread:$0]  (%p1195), %s1201, %s1202, %s1197, %s1180, 512, 4224, %s1198
        $region52: #{tpu_custom_call.1} parent=47 // pred_fallthru
          _
      $region48: #{tpu_custom_call.1} parent=5 // pred_fallthru
        _
      %p1207 = scmp.le.s32.totalorder 2, %s16
      // Predicated region
      $region53: #{tpu_custom_call.1} parent=5 // pred_check
        %p1208 = pneg %p1207
      $region54: #{tpu_custom_call.1} parent=5 // pred_check_branch
        %1210 = sbr.rel (%p1208) target = $region56
      $region55: #{tpu_custom_call.1} parent=5 // pred_region
        %s1211 = ssub.s32 %s16, 2
        // Predicated region
        $region57: #{tpu_custom_call.1} parent=55 // pred_check
          %p1212 = pneg %p197
        $region58: #{tpu_custom_call.1} parent=55 // pred_check_branch
          %1214 = sbr.rel (%p1212) target = $region60
        $region59: #{tpu_custom_call.1} parent=55 // pred_region
          %s1215 = sand.u32 %s182, 1
          %s1216 = scalar_lea.sflag [#allocation3], %s1215
          %s1217 = sand.u32 %s182, 1
          %s1218 = smul.addr %s1217, 64
          %s1219 = scalar_lea.vmem [#allocation2], %s1218
          %1220 = dma.done %s1216, 1024
        $region60: #{tpu_custom_call.1} parent=55 // pred_fallthru
          _
      $region56: #{tpu_custom_call.1} parent=5 // pred_fallthru
        _
    $region6: #{tpu_custom_call.1} parent=1 // loop_footer
      %s20 = sadd.s32 1, %s16
    $region7: #{tpu_custom_call.1} parent=1 // loop_footer_branch
      %15 = sbr.rel target = $region3
    $region8: #{tpu_custom_call.1} parent=1 // loop_exit
      _
    %1221 = vsyncpa [#allocation3], 1
    %s1222 = scalar_lea.sflag [#allocation3], 1
    %1223 = vsyncpa %s1222, 1

</llo_original>
